<compile_context>
chip_gen: v7x
topology: tpu7x:2x2x1
jax: 0.10.0
libtpu: 0.0.40
codegen_flags: <defaults>
</compile_context>

<pallas_src>
import functools

import jax
import jax.numpy as jnp
from jax.experimental import pallas as pl
from jax.experimental.pallas import tpu as pltpu


# --------------------------------------------------------------------------
# Fused kernel: conv (single im2col matmul) + batch stats + BN + ReLU.
# --------------------------------------------------------------------------
def _fused_conv_bn_relu_kernel(patches_ref, w_ref, gamma_ref, beta_ref, o_ref,
                               *, N, Cout, HW, eps):
    # patches_ref: (K*K*Cin, N*H*W)  im2col'd input, whole batch fused on lanes
    # w_ref:       (Cout, K*K*Cin)   flattened weights
    # gamma_ref:   (Cout, 1)         BN affine scale
    # beta_ref:    (Cout, 1)         BN affine shift
    # o_ref:       (N, Cout, H*W)    lane-dense output (maps 1:1 to NCHW)
    #
    # TODO(synk): on v6e/v7x, cast patches/weights to bfloat16 for the MXU
    #             (keep preferred_element_type=f32 and BN math in f32) once the
    #             1e-3 allclose tolerance is re-validated for the target sizes.
    y = jax.lax.dot_general(                                   # one MXU matmul
        w_ref[...], patches_ref[...],
        dimension_numbers=(((1,), (0,)), ((), ())),
        preferred_element_type=jnp.float32)                    # (Cout, N*HW)

    # BatchNorm training-mode statistics (biased variance over N*H*W).
    # Exactly two cross-lane (XLU) reductions total.
    ssum = jnp.sum(y, axis=1, keepdims=True)                   # (Cout, 1)
    ssq = jnp.sum(y * y, axis=1, keepdims=True)                # (Cout, 1)
    inv_count = jnp.float32(1.0 / (N * HW))
    mean = ssum * inv_count
    var = jnp.maximum(ssq * inv_count - mean * mean, 0.0)      # cancellation guard
    scale = gamma_ref[...] * jax.lax.rsqrt(var + eps)          # (Cout, 1)
    bias = beta_ref[...] - mean * scale                        # (Cout, 1)

    # Normalize + ReLU once on the fused result (single broadcast of scale/bias).
    yn = jnp.maximum(y * scale + bias, 0.0).astype(o_ref.dtype)  # (Cout, N*HW)

    # Per-n stores: static, 128-aligned lane slices -> unmasked lane-dense vst.
    for n in range(N):
        o_ref[n] = yn[:, n * HW:(n + 1) * HW]


@functools.partial(jax.jit, static_argnames=("padding", "eps"))
def conv_bn_relu(x_nchw, w_oihw, gamma, beta, *, padding=1, eps=1e-5):
    """ConvBNReLU forward. x: (N, Cin, H, W) NCHW f32, w: (Cout, Cin, K, K)."""
    N, Cin, H, W = x_nchw.shape
    Cout, _, K, _ = w_oihw.shape
    HW = H * W
    NHW = N * HW
    KKC = K * K * Cin
    # TODO(synk): only stride=1, dilation=1, groups=1, relu6=False implemented
    #             (matches the chosen module configuration).
    # TODO(synk): at production H/W/C, move im2col into the kernel (DMA raw x
    #             tiles with a K-1 halo, realize kh/kw offsets with aligned
    #             pl.ds + pltpu.roll), put HW/N tiles on a grid (leading
    #             "parallel" axis so v7x's 2nd TensorCore is used, two-phase
    #             stats combine), and size tiles for v7x's 64 MiB VMEM via
    #             vmem_limit_bytes instead of whole-batch-in-VMEM.

    # ---- glue: im2col with N folded into the trailing (lane) axis ---------
    x = x_nchw.astype(jnp.float32)
    xp = jnp.pad(x, ((0, 0), (0, 0), (padding, padding), (padding, padding)))
    cols = [jnp.transpose(xp[:, :, kh:kh + H, kw:kw + W], (1, 0, 2, 3))
            .reshape(Cin, NHW)
            for kh in range(K) for kw in range(K)]
    patches = jnp.concatenate(cols, axis=0)                    # (KKC, N*HW)

    # weights (Cout, Cin, K, K) -> (Cout, K, K, Cin) -> (Cout, KKC); matches
    # the (kh, kw, cin) ordering of `patches` rows.
    w_mat = jnp.transpose(w_oihw, (0, 2, 3, 1)).reshape(Cout, KKC).astype(jnp.float32)
    g = gamma.reshape(Cout, 1).astype(jnp.float32)
    b = beta.reshape(Cout, 1).astype(jnp.float32)

    kernel = functools.partial(
        _fused_conv_bn_relu_kernel, N=N, Cout=Cout, HW=HW, eps=eps)

    flops = 2 * NHW * KKC * Cout + 6 * NHW * Cout
    bytes_accessed = 4 * (KKC * NHW + Cout * KKC + 2 * Cout + Cout * NHW)

    out = pl.pallas_call(
        kernel,
        out_shape=jax.ShapeDtypeStruct((N, Cout, HW), jnp.float32),
        grid_spec=pltpu.PrefetchScalarGridSpec(
            num_scalar_prefetch=0,
            grid=(1,),
            in_specs=[
                pl.BlockSpec((KKC, NHW), lambda i: (0, 0)),
                pl.BlockSpec((Cout, KKC), lambda i: (0, 0)),
                pl.BlockSpec((Cout, 1), lambda i: (0, 0)),
                pl.BlockSpec((Cout, 1), lambda i: (0, 0)),
            ],
            out_specs=pl.BlockSpec((N, Cout, HW), lambda i: (0, 0, 0)),
        ),
        compiler_params=pltpu.CompilerParams(
            dimension_semantics=("arbitrary",)),
        cost_estimate=pl.CostEstimate(
            flops=flops, transcendentals=Cout, bytes_accessed=bytes_accessed),
    )(patches, w_mat, g, b)

    # (N, Cout, H*W) -> (N, Cout, H, W): pure metadata reshape, already NCHW.
    return out.reshape(N, Cout, H, W)


def _reference(x_nchw, w_oihw, gamma, beta, padding=1, eps=1e-5):
    """Pure-JAX reference of the PyTorch forward (training-mode BN)."""
    x = jnp.transpose(x_nchw, (0, 2, 3, 1))
    w = jnp.transpose(w_oihw, (2, 3, 1, 0))
    y = jax.lax.conv_general_dilated(
        x, w, window_strides=(1, 1),
        padding=((padding, padding), (padding, padding)),
        dimension_numbers=("NHWC", "HWIO", "NHWC"))
    mean = jnp.mean(y, axis=(0, 1, 2))
    var = jnp.var(y, axis=(0, 1, 2))          # biased, as BN uses for normalization
    yn = (y - mean) / jnp.sqrt(var + eps) * gamma + beta
    return jnp.transpose(jnp.maximum(yn, 0.0), (0, 3, 1, 2))


if __name__ == "__main__":
    N, Cin, H, W = 2, 4, 16, 16
    Cout, K = 8, 3

    key = jax.random.PRNGKey(0)
    kx, kw = jax.random.split(key)
    x = jax.random.normal(kx, (N, Cin, H, W), dtype=jnp.float32)
    # Conv2d default init scale (kaiming-uniform-ish bound); deterministic normal here.
    w = jax.random.normal(kw, (Cout, Cin, K, K), dtype=jnp.float32) * 0.1
    gamma = jnp.ones((Cout,), jnp.float32)    # BatchNorm2d default init
    beta = jnp.zeros((Cout,), jnp.float32)

    out = conv_bn_relu(x, w, gamma, beta, padding=1)
    out = jax.block_until_ready(out)

    ref = _reference(x, w, gamma, beta, padding=1)
    assert out.shape == (N, Cout, H, W)
    assert jnp.allclose(out, ref, rtol=1e-3, atol=1e-3), (
        float(jnp.max(jnp.abs(out - ref))))

    print("KERNEL_OK")
</pallas_src>

<mosaic_0001>
module attributes {stable_mosaic.version = 11 : i64} {
  func.func @_fused_conv_bn_relu_kernel(%arg0: i32, %arg1: memref<36x512xf32, #tpu.memory_space<vmem>>, %arg2: memref<8x36xf32, #tpu.memory_space<vmem>>, %arg3: memref<8x1xf32, #tpu.memory_space<vmem>>, %arg4: memref<8x1xf32, #tpu.memory_space<vmem>>, %arg5: memref<2x8x256xf32, #tpu.memory_space<vmem>>) attributes {dimension_semantics = [#tpu.dimension_semantics<arbitrary>], iteration_bounds = array<i64: 1>, scalar_prefetch = 0 : i64, scratch_operands = 0 : i64, tpu.core_type = #tpu.core_type<tc>, window_params = [{pipeline_mode = #tpu.pipeline_mode<synchronous>, transform_indices = @transform_0, window_bounds = array<i64: 36, 512>}, {pipeline_mode = #tpu.pipeline_mode<synchronous>, transform_indices = @transform_1, window_bounds = array<i64: 8, 36>}, {pipeline_mode = #tpu.pipeline_mode<synchronous>, transform_indices = @transform_2, window_bounds = array<i64: 8, 1>}, {pipeline_mode = #tpu.pipeline_mode<synchronous>, transform_indices = @transform_3, window_bounds = array<i64: 8, 1>}, {pipeline_mode = #tpu.pipeline_mode<synchronous>, transform_indices = @transform_4, window_bounds = array<i64: 2, 8, 256>}]} {
    %c0 = arith.constant 0 : index
    %c0_0 = arith.constant 0 : index
    %0 = vector.load %arg2[%c0, %c0_0] : memref<8x36xf32, #tpu.memory_space<vmem>>, vector<8x36xf32>
    %c0_1 = arith.constant 0 : index
    %c0_2 = arith.constant 0 : index
    %1 = vector.load %arg1[%c0_1, %c0_2] : memref<36x512xf32, #tpu.memory_space<vmem>>, vector<36x512xf32>
    %cst = arith.constant dense<0.000000e+00> : vector<8x512xf32>
    %2 = tpu.matmul %0, %1, %cst {dimension_numbers = #tpu.dot_dimension_numbers<[1], [0], [0], [1], [0, 0, 1, 1], [], []>} : vector<8x36xf32>, vector<36x512xf32>, vector<8x512xf32> -> vector<8x512xf32>
    %cst_3 = arith.constant dense<0.000000e+00> : vector<8xf32>
    %3 = vector.multi_reduction <add>, %2, %cst_3 [1] : vector<8x512xf32> to vector<8xf32>
    %4 = vector.shape_cast %3 : vector<8xf32> to vector<8x1xf32>
    %5 = arith.mulf %2, %2 : vector<8x512xf32>
    %cst_4 = arith.constant dense<0.000000e+00> : vector<8xf32>
    %6 = vector.multi_reduction <add>, %5, %cst_4 [1] : vector<8x512xf32> to vector<8xf32>
    %7 = vector.shape_cast %6 : vector<8xf32> to vector<8x1xf32>
    %cst_5 = arith.constant 0.001953125 : f32
    %8 = vector.broadcast %cst_5 : f32 to vector<8x1xf32>
    %9 = arith.mulf %4, %8 : vector<8x1xf32>
    %cst_6 = arith.constant 0.001953125 : f32
    %10 = vector.broadcast %cst_6 : f32 to vector<8x1xf32>
    %11 = arith.mulf %7, %10 : vector<8x1xf32>
    %12 = arith.mulf %9, %9 : vector<8x1xf32>
    %13 = arith.subf %11, %12 : vector<8x1xf32>
    %cst_7 = arith.constant 0.000000e+00 : f32
    %14 = vector.broadcast %cst_7 : f32 to vector<8x1xf32>
    %15 = arith.maximumf %13, %14 : vector<8x1xf32>
    %c0_8 = arith.constant 0 : index
    %c0_9 = arith.constant 0 : index
    %16 = vector.load %arg3[%c0_8, %c0_9] : memref<8x1xf32, #tpu.memory_space<vmem>>, vector<8x1xf32>
    %cst_10 = arith.constant 9.99999974E-6 : f32
    %17 = vector.broadcast %cst_10 : f32 to vector<8x1xf32>
    %18 = arith.addf %15, %17 : vector<8x1xf32>
    %19 = math.rsqrt %18 : vector<8x1xf32>
    %20 = arith.mulf %16, %19 : vector<8x1xf32>
    %c0_11 = arith.constant 0 : index
    %c0_12 = arith.constant 0 : index
    %21 = vector.load %arg4[%c0_11, %c0_12] : memref<8x1xf32, #tpu.memory_space<vmem>>, vector<8x1xf32>
    %22 = arith.mulf %9, %20 : vector<8x1xf32>
    %23 = arith.subf %21, %22 : vector<8x1xf32>
    %24 = vector.broadcast %20 : vector<8x1xf32> to vector<8x512xf32>
    %25 = arith.mulf %2, %24 : vector<8x512xf32>
    %26 = vector.broadcast %23 : vector<8x1xf32> to vector<8x512xf32>
    %27 = arith.addf %25, %26 : vector<8x512xf32>
    %cst_13 = arith.constant 0.000000e+00 : f32
    %28 = vector.broadcast %cst_13 : f32 to vector<8x512xf32>
    %29 = arith.maximumf %27, %28 : vector<8x512xf32>
    %30 = vector.extract_strided_slice %29 {offsets = [0, 0], sizes = [8, 256], strides = [1, 1]} : vector<8x512xf32> to vector<8x256xf32>
    %c0_14 = arith.constant 0 : index
    %c0_15 = arith.constant 0 : index
    %c0_16 = arith.constant 0 : index
    %31 = vector.load %arg5[%c0_14, %c0_15, %c0_16] : memref<2x8x256xf32, #tpu.memory_space<vmem>>, vector<1x8x256xf32>
    %32 = vector.shape_cast %31 : vector<1x8x256xf32> to vector<8x256xf32>
    %33 = vector.shape_cast %30 : vector<8x256xf32> to vector<1x8x256xf32>
    tpu.vector_store %arg5[%c0_14, %c0_15, %c0_16], %33 {strides = array<i32>} : memref<2x8x256xf32, #tpu.memory_space<vmem>>, vector<1x8x256xf32>,
    %34 = vector.extract_strided_slice %29 {offsets = [0, 256], sizes = [8, 256], strides = [1, 1]} : vector<8x512xf32> to vector<8x256xf32>
    %c1 = arith.constant 1 : index
    %c0_17 = arith.constant 0 : index
    %c0_18 = arith.constant 0 : index
    %35 = vector.load %arg5[%c1, %c0_17, %c0_18] : memref<2x8x256xf32, #tpu.memory_space<vmem>>, vector<1x8x256xf32>
    %36 = vector.shape_cast %35 : vector<1x8x256xf32> to vector<8x256xf32>
    %37 = vector.shape_cast %34 : vector<8x256xf32> to vector<1x8x256xf32>
    tpu.vector_store %arg5[%c1, %c0_17, %c0_18], %37 {strides = array<i32>} : memref<2x8x256xf32, #tpu.memory_space<vmem>>, vector<1x8x256xf32>,
    return
  }
  func.func @transform_0(%arg0: i32) -> (i32, i32) {
    %c0_i32 = arith.constant 0 : i32
    %c0_i32_0 = arith.constant 0 : i32
    %c0_i32_1 = arith.constant 0 : i32
    return %c0_i32, %c0_i32_0 : i32, i32
  }
  func.func @transform_1(%arg0: i32) -> (i32, i32) {
    %c0_i32 = arith.constant 0 : i32
    %c0_i32_0 = arith.constant 0 : i32
    %c0_i32_1 = arith.constant 0 : i32
    return %c0_i32, %c0_i32_0 : i32, i32
  }
  func.func @transform_2(%arg0: i32) -> (i32, i32) {
    %c0_i32 = arith.constant 0 : i32
    %c0_i32_0 = arith.constant 0 : i32
    %c0_i32_1 = arith.constant 0 : i32
    return %c0_i32, %c0_i32_0 : i32, i32
  }
  func.func @transform_3(%arg0: i32) -> (i32, i32) {
    %c0_i32 = arith.constant 0 : i32
    %c0_i32_0 = arith.constant 0 : i32
    %c0_i32_1 = arith.constant 0 : i32
    return %c0_i32, %c0_i32_0 : i32, i32
  }
  func.func @transform_4(%arg0: i32) -> (i32, i32, i32) {
    %c0_i32 = arith.constant 0 : i32
    %c0_i32_0 = arith.constant 0 : i32
    %c0_i32_1 = arith.constant 0 : i32
    %c0_i32_2 = arith.constant 0 : i32
    return %c0_i32, %c0_i32_0, %c0_i32_1 : i32, i32, i32
  }
}

</mosaic_0001>

<llo_original>
// kernel: conv_bn_relu.1
$region0: #{conv_bn_relu.1}
  #allocation0 [shape = 'u32[]', space=smem, size = 0x4, offset = 0x4, fixed_abs, tag = 'smem constant byte address 0x4 - core index']
  #allocation1 [shape = 'u32[144,128]{1,0:T(1,128)}', space=vmem, size = 0x12000, scoped, tag = 'internal scratch']
  %s0 = inlined_call_operand.vmem [shape: f32[36,512], index: 0, kind: input, shape index: {}]
  %s1 = inlined_call_operand.vmem [shape: f32[8,36], index: 1, kind: input, shape index: {}]
  %s2 = inlined_call_operand.vmem [shape: f32[8,1], index: 2, kind: input, shape index: {}]
  %s3 = inlined_call_operand.vmem [shape: f32[8,1], index: 3, kind: input, shape index: {}]
  %s4 = inlined_call_operand.vmem [shape: f32[2,8,256], index: 4, kind: output, shape index: {}]
  %s5 = sld [smem:[#allocation0]]
  $region26: #{conv_bn_relu.1} parent=0
    _
  %s7 = ssub.s32 1, %s5
  %s8 = scalar_select 0, %s7, %s5
  // Predicated region
  $region2: #{conv_bn_relu.1} parent=0 // pred_check
    _
  $region3: #{conv_bn_relu.1} parent=0 // pred_check_branch
    %10 = sbr.rel (0) target = $region5
  $region4: #{conv_bn_relu.1} parent=0 // pred_region
    _
  $region5: #{conv_bn_relu.1} parent=0 // pred_fallthru
    _
  // Predicated region
  $region6: #{conv_bn_relu.1} parent=0 // pred_check
    _
  $region7: #{conv_bn_relu.1} parent=0 // pred_check_branch
    %12 = sbr.rel (0) target = $region9
  $region8: #{conv_bn_relu.1} parent=0 // pred_region
    _
  $region9: #{conv_bn_relu.1} parent=0 // pred_fallthru
    _
  // Predicated region
  $region10: #{conv_bn_relu.1} parent=0 // pred_check
    _
  $region11: #{conv_bn_relu.1} parent=0 // pred_check_branch
    %14 = sbr.rel (0) target = $region13
  $region12: #{conv_bn_relu.1} parent=0 // pred_region
    _
  $region13: #{conv_bn_relu.1} parent=0 // pred_fallthru
    _
  // Predicated region
  $region14: #{conv_bn_relu.1} parent=0 // pred_check
    _
  $region15: #{conv_bn_relu.1} parent=0 // pred_check_branch
    %16 = sbr.rel (0) target = $region17
  $region16: #{conv_bn_relu.1} parent=0 // pred_region
    _
  $region17: #{conv_bn_relu.1} parent=0 // pred_fallthru
    _
  %v17 = vld [vmem:[%s1] sm:$0xff]
  %v18 = vld [vmem:[%s0] sm:$0xff]
  %v19 = vld [vmem:[%s0 + $0x8] sm:$0xff]
  %v20 = vld [vmem:[%s0 + $0x10] sm:$0xff]
  %v21 = vld [vmem:[%s0 + $0x18] sm:$0xff]
  %v22 = vld [vmem:[%s0 + $0x20] sm:$0xff]
  %v23 = vld [vmem:[%s0 + $0x28] sm:$0xff]
  %v24 = vld [vmem:[%s0 + $0x30] sm:$0xff]
  %v25 = vld [vmem:[%s0 + $0x38] sm:$0xff]
  %v26 = vld [vmem:[%s0 + $0x40] sm:$0xff]
  %v27 = vld [vmem:[%s0 + $0x48] sm:$0xff]
  %v28 = vld [vmem:[%s0 + $0x50] sm:$0xff]
  %v29 = vld [vmem:[%s0 + $0x58] sm:$0xff]
  %v30 = vld [vmem:[%s0 + $0x60] sm:$0xff]
  %v31 = vld [vmem:[%s0 + $0x68] sm:$0xff]
  %v32 = vld [vmem:[%s0 + $0x70] sm:$0xff]
  %v33 = vld [vmem:[%s0 + $0x78] sm:$0xff]
  %v34 = vld [vmem:[%s0 + $0x80] sm:$0xf]
  %v35 = vld [vmem:[%s0 + $0x88] sm:$0xf]
  %v36 = vld [vmem:[%s0 + $0x90] sm:$0xf]
  %v37 = vld [vmem:[%s0 + $0x98] sm:$0xf]
  %vm38 = vcmask 293888
  %v40 = vsel %vm38, %v17, 0
  %vm42 = vcmask 1043456
  %v44 = vsel %vm42, %v34, 0
  %v47 = vsel %vm42, %v35, 0
  %v50 = vsel %vm42, %v36, 0
  %v53 = vsel %vm42, %v37, 0
  %55 = vmatprep.subr.mxu0 %v19
  %56 = vmatpush1.msra.mxu0 %v18
  %57 = vmatprep.subr.mxu0 %v23
  %58 = vmatpush1.msra.mxu0 %v22
  %59 = vmatprep.subr.mxu0 %v27
  %60 = vmatpush1.msra.mxu0 %v26
  %61 = vmatprep.subr.mxu0 %v31
  %62 = vmatpush1.msra.mxu0 %v30
  %63 = vmatprep.subr.mxu0 %v47
  %64 = vmatpush1.msra.mxu0 %v44
  %65 = vmatprep.subr.mxu0 0.0
  %66 = vmatpush1.msra.mxu0 0.0
  %67 = vmatprep.subr.mxu0 0.0
  %68 = vmatpush1.msra.mxu0 0.0
  %69 = vmatprep.subr.mxu0 0.0
  %70 = vmatpush1.msra.mxu0 0.0
  %71 = vmatprep.subr.mxu0 0.0
  %72 = vmatpush1.msra.mxu0 0.0
  %73 = vmatprep.subr.mxu0 0.0
  %74 = vmatpush1.msra.mxu0 0.0
  %75 = vmatprep.subr.mxu0 0.0
  %76 = vmatpush1.msra.mxu0 0.0
  %77 = vmatprep.subr.mxu0 0.0
  %78 = vmatpush1.msra.mxu0 0.0
  %79 = vmatprep.subr.mxu0 0.0
  %80 = vmatpush1.msra.mxu0 0.0
  %81 = vmatprep.subr.mxu0 0.0
  %82 = vmatpush1.msra.mxu0 0.0
  %83 = vmatprep.subr.mxu0 0.0
  %84 = vmatpush1.msra.mxu0 0.0
  %85 = vmatprep.subr.mxu0 0.0
  %86 = vmatpush1.msra.mxu0 0.0
  %87 = vmatprep.subr.mxu0 0.0
  %88 = vmatpush1.msra.mxu0 0.0
  %89 = vmatprep.subr.mxu0 0.0
  %90 = vmatpush1.msra.mxu0 0.0
  %91 = vmatprep.subr.mxu0 0.0
  %92 = vmatpush1.msra.mxu0 0.0
  %93 = vmatprep.subr.mxu0 0.0
  %94 = vmatpush1.msra.mxu0 0.0
  %95 = vmatprep.subr.mxu0 0.0
  %96 = vmatpush1.msra.mxu0 0.0
  %97 = vmatprep.subr.mxu0 0.0
  %98 = vmatpush1.msra.mxu0 0.0
  %99 = vmatprep.subr.mxu0 0.0
  %100 = vmatpush1.msra.mxu0 0.0
  %101 = vmatprep.subr.mxu0 0.0
  %102 = vmatpush1.msra.mxu0 0.0
  %103 = vmatprep.subr.mxu0 0.0
  %104 = vmatpush1.msra.mxu0 0.0
  %105 = vmatprep.subr.mxu0 0.0
  %106 = vmatpush1.msra.mxu0 0.0
  %107 = vmatprep.subr.mxu0 0.0
  %108 = vmatpush1.msra.mxu0 0.0
  %109 = vmatprep.subr.mxu0 0.0
  %110 = vmatpush1.msra.mxu0 0.0
  %111 = vmatprep.subr.mxu0 0.0
  %112 = vmatpush1.msra.mxu0 0.0
  %113 = vmatprep.subr.mxu0 0.0
  %114 = vmatpush1.msra.mxu0 0.0
  %115 = vmatprep.subr.mxu0 0.0
  %116 = vmatpush1.msra.mxu0 0.0
  %117 = vmatprep.subr.mxu0 0.0
  %118 = vmatpush1.msra.mxu0 0.0
  %119 = vmatprep.mubr.f32.mxu0 0.0
  %120 = vmatmul.mubr.f32.gmra.mrb[0].mxu0 %v40
  %v121 = vpop.f32.mrb[0].mxu0
  %v122 = vadd.f32 0.0, %v121
  %v123 = vpop.f32.mrb[0].mxu0
  %v124 = vadd.f32 0.0, %v123
  %125 = vdwg.mxu0
  %126 = vmatprep.subr.mxu0 %v21
  %127 = vmatpush1.msra.mxu0 %v20
  %128 = vmatprep.subr.mxu0 %v25
  %129 = vmatpush1.msra.mxu0 %v24
  %130 = vmatprep.subr.mxu0 %v29
  %131 = vmatpush1.msra.mxu0 %v28
  %132 = vmatprep.subr.mxu0 %v33
  %133 = vmatpush1.msra.mxu0 %v32
  %134 = vmatprep.subr.mxu0 %v53
  %135 = vmatpush1.msra.mxu0 %v50
  %136 = vmatprep.subr.mxu0 0.0
  %137 = vmatpush1.msra.mxu0 0.0
  %138 = vmatprep.subr.mxu0 0.0
  %139 = vmatpush1.msra.mxu0 0.0
  %140 = vmatprep.subr.mxu0 0.0
  %141 = vmatpush1.msra.mxu0 0.0
  %142 = vmatprep.subr.mxu0 0.0
  %143 = vmatpush1.msra.mxu0 0.0
  %144 = vmatprep.subr.mxu0 0.0
  %145 = vmatpush1.msra.mxu0 0.0
  %146 = vmatprep.subr.mxu0 0.0
  %147 = vmatpush1.msra.mxu0 0.0
  %148 = vmatprep.subr.mxu0 0.0
  %149 = vmatpush1.msra.mxu0 0.0
  %150 = vmatprep.subr.mxu0 0.0
  %151 = vmatpush1.msra.mxu0 0.0
  %152 = vmatprep.subr.mxu0 0.0
  %153 = vmatpush1.msra.mxu0 0.0
  %154 = vmatprep.subr.mxu0 0.0
  %155 = vmatpush1.msra.mxu0 0.0
  %156 = vmatprep.subr.mxu0 0.0
  %157 = vmatpush1.msra.mxu0 0.0
  %158 = vmatprep.subr.mxu0 0.0
  %159 = vmatpush1.msra.mxu0 0.0
  %160 = vmatprep.subr.mxu0 0.0
  %161 = vmatpush1.msra.mxu0 0.0
  %162 = vmatprep.subr.mxu0 0.0
  %163 = vmatpush1.msra.mxu0 0.0
  %164 = vmatprep.subr.mxu0 0.0
  %165 = vmatpush1.msra.mxu0 0.0
  %166 = vmatprep.subr.mxu0 0.0
  %167 = vmatpush1.msra.mxu0 0.0
  %168 = vmatprep.subr.mxu0 0.0
  %169 = vmatpush1.msra.mxu0 0.0
  %170 = vmatprep.subr.mxu0 0.0
  %171 = vmatpush1.msra.mxu0 0.0
  %172 = vmatprep.subr.mxu0 0.0
  %173 = vmatpush1.msra.mxu0 0.0
  %174 = vmatprep.subr.mxu0 0.0
  %175 = vmatpush1.msra.mxu0 0.0
  %176 = vmatprep.subr.mxu0 0.0
  %177 = vmatpush1.msra.mxu0 0.0
  %178 = vmatprep.subr.mxu0 0.0
  %179 = vmatpush1.msra.mxu0 0.0
  %180 = vmatprep.subr.mxu0 0.0
  %181 = vmatpush1.msra.mxu0 0.0
  %182 = vmatprep.subr.mxu0 0.0
  %183 = vmatpush1.msra.mxu0 0.0
  %184 = vmatprep.subr.mxu0 0.0
  %185 = vmatpush1.msra.mxu0 0.0
  %186 = vmatprep.subr.mxu0 0.0
  %187 = vmatpush1.msra.mxu0 0.0
  %188 = vmatprep.subr.mxu0 0.0
  %189 = vmatpush1.msra.mxu0 0.0
  %190 = vmatprep.mubr.f32.mxu0 0.0
  %191 = vmatmul.mubr.f32.gmra.mrb[0].mxu0 %v40
  %v192 = vpop.f32.mrb[0].mxu0
  %v193 = vadd.f32 0.0, %v192
  %v194 = vpop.f32.mrb[0].mxu0
  %v195 = vadd.f32 0.0, %v194
  %196 = vdwg.mxu0
  %v197 = vadd.f32 %v122, %v124
  %v198 = vadd.f32 %v197, %v193
  %v199 = vadd.f32 %v198, %v195
  %200 = vadd.xlane.f32.xlu0 %v199
  %v201 = vpop.xlane.xlu0 %200
  %v202 = vmul.f32 %v122, %v122
  %v203 = vmul.f32 %v124, %v124
  %v204 = vmul.f32 %v193, %v193
  %v205 = vmul.f32 %v195, %v195
  %v206 = vadd.f32 %v202, %v203
  %v207 = vadd.f32 %v206, %v204
  %v208 = vadd.f32 %v207, %v205
  %209 = vadd.xlane.f32.xlu0 %v208
  %v210 = vpop.xlane.xlu0 %209
  %v211 = vmul.f32 %v201, 0.001953125
  %v212 = vmul.f32 %v210, 0.001953125
  %v213 = vmul.f32 %v211, %v211
  %v214 = vsub.f32 %v212, %v213
  %v215 = vmax.f32 %v214, 0.0
  %v216 = vld [vmem:[%s2] sm:$0xff]
  %v217 = vadd.f32 %v215, 1e-05
  %v218 = vrsqrt.pop %v217
  %v219 = vmul.f32 %v216, %v218
  %v220 = vld [vmem:[%s3] sm:$0xff]
  %v221 = vmul.f32 %v211, %v219
  %v222 = vsub.f32 %v220, %v221
  %224 = vset.pattern.permute.xlu0 0
  %225 = vperm.xlu0 %224, %v219
  %v226 = vpop.permute.xlu0 %225
  %v228 = vmul.f32 %v122, %v226
  %v229 = vmul.f32 %v124, %v226
  %v230 = vmul.f32 %v193, %v226
  %v231 = vmul.f32 %v195, %v226
  %233 = vset.pattern.permute.xlu0 0
  %234 = vperm.xlu0 %233, %v222
  %v235 = vpop.permute.xlu0 %234
  %v237 = vadd.f32 %v228, %v235
  %v238 = vadd.f32 %v229, %v235
  %v239 = vadd.f32 %v230, %v235
  %v240 = vadd.f32 %v231, %v235
  %v241 = vmax.f32 %v237, 0.0
  %v242 = vmax.f32 %v238, 0.0
  %v243 = vmax.f32 %v239, 0.0
  %v244 = vmax.f32 %v240, 0.0
  %245 = vst [vmem:[%s4] sm:$0xff] %v241
  %246 = vst [vmem:[%s4 + $0x8] sm:$0xff] %v242
  %s247 = scalar_lea.vmem %s4, 16
  %248 = vst [vmem:[%s247] sm:$0xff] %v243
  %249 = vst [vmem:[%s247 + $0x8] sm:$0xff] %v244
  // Predicated region
  $region18: #{conv_bn_relu.1} parent=0 // pred_check
    _
  $region19: #{conv_bn_relu.1} parent=0 // pred_check_branch
    %251 = sbr.rel (0) target = $region21
  $region20: #{conv_bn_relu.1} parent=0 // pred_region
    _
  $region21: #{conv_bn_relu.1} parent=0 // pred_fallthru
    _
  // Predicated region
  $region22: #{conv_bn_relu.1} parent=0 // pred_check
    _
  $region23: #{conv_bn_relu.1} parent=0 // pred_check_branch
    %253 = sbr.rel (0) target = $region25
  $region24: #{conv_bn_relu.1} parent=0 // pred_region
    _
  $region25: #{conv_bn_relu.1} parent=0 // pred_fallthru
    _

</llo_original>
